<compile_context>
chip_gen: v6e
topology: v6e:2x2x1
jax: 0.10.0
libtpu: 0.0.40
codegen_flags: <defaults>
</compile_context>

<pallas_src>
import math

import jax
import jax.numpy as jnp
from jax.experimental import pallas as pl
from jax.experimental.pallas import tpu as pltpu


# ---------------- tunables ----------------
_TL_MAX = 2048              # lane-tile cap (multiple of 128)
_TR_TARGET = 512            # row-tile target (multiple of 8)
_BLOCK_BYTES_MAX = 6 << 20  # cap a single x tile at 6 MiB -> ~28 MiB live w/ dbl-buffer
_PALLAS_MIN_BYTES = 1 << 19 # below 512 KiB, plain XLA add is faster than a kernel launch


def _add_kernel(x_ref, b_ref, o_ref):
    # Pure VPU broadcast add: (TR, TL) + (TR, 1)  or  (TR, TL) + (1, TL).
    o_ref[...] = x_ref[...] + b_ref[...]


# ---------------- tile selection ----------------
def _lane_tile(L):
    # Full dim is always a legal block extent; otherwise use a 128-multiple tile.
    return L if L <= _TL_MAX else _TL_MAX


def _row_budget(TL, itemsize):
    return max(8, _BLOCK_BYTES_MAX // (TL * itemsize))


def _row_tile_2d(R, TL, itemsize):
    target = min(_TR_TARGET, _row_budget(TL, itemsize))
    if R <= target:
        return R                      # full dim (always legal)
    return max(8, (target // 8) * 8)  # multiple of 8


def _row_tile_4d(R, C, TL, itemsize):
    """Row tile for the (N*C, H*W) view.  Returns (TR, channel_aligned)."""
    target = min(_TR_TARGET, _row_budget(TL, itemsize))
    if R <= target:
        return R, True                       # full dim; R = N*C is a multiple of C
    base = (C * 8) // math.gcd(C, 8)         # lcm(C, 8): multiple of 8 and of C
    if base <= target:
        return (target // base) * base, True
    # Channel-aligned tile doesn't fit the budget (very large C): fall back to a
    # per-row bias column (only N*C elements -> tiny) indexed by the row-tile id.
    return max(8, (target // 8) * 8), False


# ---------------- tiled pallas call ----------------
def _pallas_tiled_add(x2d, b2d, b_block_shape, b_index_map, TR, TL):
    """Grid = (lane_tiles, row_tiles); inner axis sweeps rows (bias reuse)."""
    R, L = x2d.shape
    itemsize = x2d.dtype.itemsize
    grid = (pl.cdiv(L, TL), pl.cdiv(R, TR))

    # VMEM estimate: x-in + out tiles (double buffered) + padded bias blocks + headroom.
    x_tile = TR * TL * itemsize
    b_rows = -(-b_block_shape[0] // 8) * 8
    b_lanes = -(-b_block_shape[1] // 128) * 128
    b_tile = b_rows * b_lanes * itemsize
    est = 2 * (x_tile + x_tile) + 2 * b_tile + (4 << 20)
    vmem_limit = int(min(max(est, 32 << 20), 56 << 20))  # safe on v5e/v6e/v7x

    return pl.pallas_call(
        _add_kernel,
        out_shape=jax.ShapeDtypeStruct((R, L), x2d.dtype),
        grid=grid,
        in_specs=[
            pl.BlockSpec((TR, TL), lambda j, i: (i, j)),
            pl.BlockSpec(b_block_shape, b_index_map),
        ],
        out_specs=pl.BlockSpec((TR, TL), lambda j, i: (i, j)),
        compiler_params=pltpu.CompilerParams(
            dimension_semantics=("parallel", "parallel"),
            vmem_limit_bytes=vmem_limit,
        ),
    )(x2d, b2d)


def _add_bias_2d(x2d, b_row):
    """x2d: (N, C);  b_row: (1, C)."""
    R, L = x2d.shape
    itemsize = x2d.dtype.itemsize
    TL = _lane_tile(L)
    TR = _row_tile_2d(R, TL, itemsize)
    # Bias block index depends only on the (outer) lane-tile id j -> stays
    # resident in VMEM across the whole inner row sweep.
    return _pallas_tiled_add(x2d, b_row, (1, TL), lambda j, i: (0, j), TR, TL)


def _add_bias_4d(x2d, bias_c, C):
    """x2d: (N*C, H*W) view of NCHW;  bias_c: (C,)."""
    R, L = x2d.shape
    itemsize = x2d.dtype.itemsize
    TL = _lane_tile(L)
    TR, aligned = _row_tile_4d(R, C, TL, itemsize)
    if aligned:
        # Tiny (TR, 1) bias column, constant block index -> resident in VMEM.
        b = jnp.reshape(jnp.tile(bias_c, TR // C), (TR, 1))
        return _pallas_tiled_add(x2d, b, (TR, 1), lambda j, i: (0, 0), TR, TL)
    # Rare large-C fallback: a full (R, 1) bias column (R = N*C, still tiny),
    # indexed by the row-tile id.
    b = jnp.reshape(jnp.tile(bias_c, R // C), (R, 1))
    return _pallas_tiled_add(x2d, b, (TR, 1), lambda j, i: (i, 0), TR, TL)


def _use_fallback(x, lane_dim):
    # Tiny tensors or sub-128-lane layouts: plain XLA add wins (no launch/step
    # overhead, no masked vst.msk partial stores).
    return (x.size * x.dtype.itemsize) < _PALLAS_MIN_BYTES or lane_dim < 128


# ---------------- module ----------------
class AddBias:
    """JAX/Pallas port of the PyTorch AddBias module."""

    def __init__(self, bias):
        # nn.Parameter(bias.unsqueeze(1)) -> shape (C, 1)
        self._bias = jnp.reshape(jnp.asarray(bias), (-1, 1))

    def __call__(self, x):
        c = self._bias.shape[0]
        out_dtype = jnp.result_type(x.dtype, self._bias.dtype)  # PyTorch-style promotion
        xs = x.astype(out_dtype)

        if x.ndim == 2:
            n, feat = x.shape
            assert feat == c
            b_row = jnp.reshape(self._bias.T, (1, c)).astype(out_dtype)
            if _use_fallback(xs, lane_dim=c):
                return xs + b_row
            return _add_bias_2d(xs, b_row)

        # 4D NCHW
        n, ch, h, w = x.shape
        assert ch == c
        bias_flat = jnp.reshape(self._bias, (c,)).astype(out_dtype)
        if _use_fallback(xs, lane_dim=h * w):
            return xs + jnp.reshape(bias_flat, (1, c, 1, 1))
        x2d = jnp.reshape(xs, (n * ch, h * w))
        out2d = _add_bias_4d(x2d, bias_flat, ch)
        return jnp.reshape(out2d, (n, ch, h, w))


if __name__ == "__main__":
    key = jax.random.PRNGKey(0)
    ks = jax.random.split(key, 8)

    # 1) Tiny 4D NCHW (fallback path, matches the module's typical small use).
    x4 = jax.random.normal(ks[0], (2, 4, 16, 16), dtype=jnp.float32)
    b4 = jax.random.normal(ks[1], (4,), dtype=jnp.float32)
    out4 = jax.block_until_ready(AddBias(b4)(x4))
    ref4 = x4 + b4.reshape(1, 4, 1, 1)
    assert out4.shape == x4.shape and out4.dtype == x4.dtype
    assert jnp.allclose(out4, ref4, atol=1e-6), "tiny 4D mismatch"

    # 2) Tiny 2D (fallback path).
    x2 = jax.random.normal(ks[2], (2, 32), dtype=jnp.float32)
    b2 = jax.random.normal(ks[3], (32,), dtype=jnp.float32)
    out2 = jax.block_until_ready(AddBias(b2)(x2))
    ref2 = x2 + b2.reshape(1, 32)
    assert out2.shape == x2.shape and out2.dtype == x2.dtype
    assert jnp.allclose(out2, ref2, atol=1e-6), "tiny 2D mismatch"

    # 3) 4D big enough for the tiled Pallas path (lane-dense, multiple lane tiles).
    x4b = jax.random.normal(ks[4], (4, 8, 64, 128), dtype=jnp.float32)
    b4b = jax.random.normal(ks[5], (8,), dtype=jnp.float32)
    out4b = jax.block_until_ready(AddBias(b4b)(x4b))
    ref4b = x4b + b4b.reshape(1, 8, 1, 1)
    assert out4b.shape == x4b.shape and out4b.dtype == x4b.dtype
    assert jnp.allclose(out4b, ref4b, atol=1e-6), "tiled 4D mismatch"

    # 4) 4D Pallas path with a ragged lane edge (H*W not a multiple of the lane tile).
    x4c = jax.random.normal(ks[6], (4, 16, 50, 50), dtype=jnp.float32)
    b4c = jax.random.normal(ks[7], (16,), dtype=jnp.float32)
    out4c = jax.block_until_ready(AddBias(b4c)(x4c))
    ref4c = x4c + b4c.reshape(1, 16, 1, 1)
    assert jnp.allclose(out4c, ref4c, atol=1e-6), "ragged 4D mismatch"

    # 5) 2D Pallas path with multiple row tiles (bias row block reused across them).
    kx, kb = jax.random.split(jax.random.PRNGKey(1))
    x2b = jax.random.normal(kx, (1024, 640), dtype=jnp.float32)
    b2b = jax.random.normal(kb, (640,), dtype=jnp.float32)
    out2b = jax.block_until_ready(AddBias(b2b)(x2b))
    ref2b = x2b + b2b.reshape(1, 640)
    assert jnp.allclose(out2b, ref2b, atol=1e-6), "tiled 2D mismatch"

    print("KERNEL_OK")
</pallas_src>

<mosaic_0001>
module attributes {stable_mosaic.version = 11 : i64} {
  func.func @_add_kernel(%arg0: i32, %arg1: i32, %arg2: memref<32x2048xf32, #tpu.memory_space<vmem>>, %arg3: memref<32x1xf32, #tpu.memory_space<vmem>>, %arg4: memref<32x2048xf32, #tpu.memory_space<vmem>>) attributes {dimension_semantics = [#tpu.dimension_semantics<parallel>, #tpu.dimension_semantics<parallel>], iteration_bounds = array<i64: 4, 1>, scalar_prefetch = 0 : i64, scratch_operands = 0 : i64, tpu.core_type = #tpu.core_type<tc>, window_params = [{transform_indices = @transform_0, window_bounds = array<i64: 32, 2048>}, {pipeline_mode = #tpu.pipeline_mode<synchronous>, transform_indices = @transform_1, window_bounds = array<i64: 32, 1>}, {transform_indices = @transform_2, window_bounds = array<i64: 32, 2048>}]} {
    %c0 = arith.constant 0 : index
    %c0_0 = arith.constant 0 : index
    %0 = vector.load %arg2[%c0, %c0_0] : memref<32x2048xf32, #tpu.memory_space<vmem>>, vector<32x2048xf32>
    %c0_1 = arith.constant 0 : index
    %c0_2 = arith.constant 0 : index
    %1 = vector.load %arg3[%c0_1, %c0_2] : memref<32x1xf32, #tpu.memory_space<vmem>>, vector<32x1xf32>
    %2 = vector.broadcast %1 : vector<32x1xf32> to vector<32x2048xf32>
    %3 = arith.addf %0, %2 : vector<32x2048xf32>
    %c0_3 = arith.constant 0 : index
    %c0_4 = arith.constant 0 : index
    %4 = vector.load %arg4[%c0_3, %c0_4] : memref<32x2048xf32, #tpu.memory_space<vmem>>, vector<32x2048xf32>
    tpu.vector_store %arg4[%c0_3, %c0_4], %3 {strides = array<i32>} : memref<32x2048xf32, #tpu.memory_space<vmem>>, vector<32x2048xf32>,
    return
  }
  func.func @transform_0(%arg0: i32, %arg1: i32) -> (i32, i32) {
    %c0_i32 = arith.constant 0 : i32
    return %arg1, %arg0 : i32, i32
  }
  func.func @transform_1(%arg0: i32, %arg1: i32) -> (i32, i32) {
    %c0_i32 = arith.constant 0 : i32
    %c0_i32_0 = arith.constant 0 : i32
    %c0_i32_1 = arith.constant 0 : i32
    return %c0_i32, %c0_i32_0 : i32, i32
  }
  func.func @transform_2(%arg0: i32, %arg1: i32) -> (i32, i32) {
    %c0_i32 = arith.constant 0 : i32
    return %arg1, %arg0 : i32, i32
  }
}

</mosaic_0001>

<llo_original>
// kernel: tpu_custom_call.1
$region0: #{tpu_custom_call.1}
  #allocation0 [shape = 'u32[]', space=smem, size = 0x4, offset = 0x4, fixed_abs, tag = 'smem constant byte address 0x4 - core index']
  #allocation1 [shape = 'u32[144,128]{1,0:T(1,128)}', space=vmem, size = 0x12000, scoped, tag = 'internal scratch']
  %s0 = inlined_call_operand.hbm [shape: f32[32,8192], index: 0, kind: input, shape index: {}]
  %s1 = inlined_call_operand.vmem [shape: f32[32,1], index: 1, kind: input, shape index: {}]
  %s2 = inlined_call_operand.hbm [shape: f32[32,8192], index: 2, kind: output, shape index: {}]
  %s3 = sld [smem:[#allocation0]]
  $region45: #{tpu_custom_call.1} parent=0
    _
  %s5 = ssub.s32 1, %s3
  %s6 = scalar_select 0, %s5, %s3
  $region1: #{tpu_custom_call.1} parent=0
    #allocation2 [shape = 'u8[524288]{0}', space=vmem, size = 0x80000, scoped, tag = 'input window, operand 0']
    #allocation3 [shape = 's32[2]{0}', space=sflag, size = 0x8, scoped, tag = 'scoped memory for tpu_custom_call.1']
    #allocation4 [shape = 's32[2]{0}', space=sflag, size = 0x8, scoped, tag = 'scoped memory for tpu_custom_call.1']
    #allocation5 [shape = 'u8[524288]{0}', space=vmem, size = 0x80000, scoped, tag = 'output window, operand 0']
    %7 = vsyncpa [#allocation3], 0
    %s8 = scalar_lea.sflag [#allocation3], 1
    %9 = vsyncpa %s8, 0
    %10 = vsyncpa [#allocation4], 0
    %s11 = scalar_lea.sflag [#allocation4], 1
    %12 = vsyncpa %s11, 0
    loop: start=0, step=1, limit=6
    $region2: #{tpu_custom_call.1} parent=1 // loop_pre_header
      _
    $region3: #{tpu_custom_call.1} parent=1 // loop_header
      %s14 = sphi 0, %s18
      %p15 = scmp.ge.s32.totalorder %s14, 6
      %s21 = sphi 0, %s33
      %s22 = sphi 0, %s29
      %s23 = sphi 0, %s21
      %s24 = sphi 0, %s22
      %s25 = sphi 0, %s23
      %s26 = sphi 0, %s24
      %s38 = sphi 0, %s40
      %s41 = sphi 0, %s38
      %s42 = sphi 0, %s41
      %s58 = sphi 0, %s42
      %s62 = sphi 0, %s62
      %s64 = sphi 0, %s62
      %s65 = sphi 0, %s64
      %s79 = sphi 0, %s65
      %s87 = sphi 0, %s89
      %s90 = sphi 0, %s87
      %s91 = sphi 0, %s90
      %s107 = sphi 0, %s91
    $region4: #{tpu_custom_call.1} parent=1 // loop_header_branch
      %17 = sbr.rel (%p15) target = $region8
    $region5: #{tpu_custom_call.1} parent=1 // loop_body
      %s19 = ssub.s32 %s14, 1
      %s20 = ssub.s32 %s14, 2
      %s27 = sadd.s32 1, %s22
      %p28 = scmp.ge.s32.totalorder %s27, 1
      %s29 = scalar_select %p28, 0, %s27
      %s30 = sadd.s32 1, %s21
      %s31 = scalar_select %p28, %s30, %s21
      %p32 = scmp.ge.s32.totalorder %s31, 4
      %s33 = scalar_select %p32, 0, %s31
      %s34 = ssub.s32 %s22, %s29
      %s35 = ssub.s32 %s21, %s33
      %s36 = sor.u32 %s34, %s35
      %p37 = scmp.eq.s32.totalorder %s36, 0
      %s39 = sadd.s32 %s38, 1
      %s40 = scalar_select %p37, %s38, %s39
      %p43 = pneg %p37
      %p44 = scmp.eq.s32.totalorder %s14, 3
      %p45 = por %p43, %p44
      %p46 = scmp.ne.s32.totalorder %s38, %s41
      %p47 = scmp.eq.s32.totalorder %s14, 0
      %p48 = por %p46, %p47
      %p49 = scmp.ne.s32.totalorder %s38, %s41
      %p50 = scmp.eq.s32.totalorder %s19, 3
      %p51 = por %p49, %p50
      %p52 = scmp.ne.s32.totalorder %s41, %s42
      %p53 = scmp.eq.s32.totalorder %s19, 0
      %p54 = por %p52, %p53
      %p55 = scmp.ne.s32.totalorder %s41, %s42
      %p56 = scmp.eq.s32.totalorder %s20, 3
      %p57 = por %p55, %p56
      %p59 = scmp.ne.s32.totalorder %s42, %s58
      %p60 = scmp.eq.s32.totalorder %s20, 0
      %p61 = por %p59, %p60
      %s63 = sadd.s32 %s62, 1
      %p66 = scmp.eq.s32.totalorder %s14, 3
      %p67 = scmp.ne.s32.totalorder %s62, %s64
      %p68 = scmp.eq.s32.totalorder %s14, 0
      %p69 = por %p67, %p68
      %p70 = scmp.ne.s32.totalorder %s62, %s64
      %p71 = scmp.eq.s32.totalorder %s19, 3
      %p72 = por %p70, %p71
      %p73 = scmp.ne.s32.totalorder %s64, %s65
      %p74 = scmp.eq.s32.totalorder %s19, 0
      %p75 = por %p73, %p74
      %p76 = scmp.ne.s32.totalorder %s64, %s65
      %p77 = scmp.eq.s32.totalorder %s20, 3
      %p78 = por %p76, %p77
      %p80 = scmp.ne.s32.totalorder %s65, %s79
      %p81 = scmp.eq.s32.totalorder %s20, 0
      %p82 = por %p80, %p81
      %s83 = ssub.s32 %s22, %s29
      %s84 = ssub.s32 %s21, %s33
      %s85 = sor.u32 %s83, %s84
      %p86 = scmp.eq.s32.totalorder %s85, 0
      %s88 = sadd.s32 %s87, 1
      %s89 = scalar_select %p86, %s87, %s88
      %p92 = pneg %p86
      %p93 = scmp.eq.s32.totalorder %s14, 3
      %p94 = por %p92, %p93
      %p95 = scmp.ne.s32.totalorder %s87, %s90
      %p96 = scmp.eq.s32.totalorder %s14, 0
      %p97 = por %p95, %p96
      %p98 = scmp.ne.s32.totalorder %s87, %s90
      %p99 = scmp.eq.s32.totalorder %s19, 3
      %p100 = por %p98, %p99
      %p101 = scmp.ne.s32.totalorder %s90, %s91
      %p102 = scmp.eq.s32.totalorder %s19, 0
      %p103 = por %p101, %p102
      %p104 = scmp.ne.s32.totalorder %s90, %s91
      %p105 = scmp.eq.s32.totalorder %s20, 3
      %p106 = por %p104, %p105
      %p108 = scmp.ne.s32.totalorder %s91, %s107
      %p109 = scmp.eq.s32.totalorder %s20, 0
      %p110 = por %p108, %p109
      %p111 = scmp.le.s32.totalorder 1, %s14
      %p112 = scmp.lt.s32.totalorder %s14, 5
      %p113 = pnand %p111, %p112
      %p114 = pneg %p113
      // Predicated region
      $region9: #{tpu_custom_call.1} parent=5 // pred_check
        _
      $region10: #{tpu_custom_call.1} parent=5 // pred_check_branch
        %116 = sbr.rel (%p113) target = $region12
      $region11: #{tpu_custom_call.1} parent=5 // pred_region
        %s117 = ssub.s32 %s14, 1
        // Predicated region
        $region13: #{tpu_custom_call.1} parent=11 // pred_check
          %p118 = pneg %p75
        $region14: #{tpu_custom_call.1} parent=11 // pred_check_branch
          %120 = sbr.rel (%p118) target = $region16
        $region15: #{tpu_custom_call.1} parent=11 // pred_region
          _
        $region16: #{tpu_custom_call.1} parent=11 // pred_fallthru
          _
      $region12: #{tpu_custom_call.1} parent=5 // pred_fallthru
        _
      %p121 = scmp.lt.s32.totalorder %s14, 4
      // Predicated region
      $region17: #{tpu_custom_call.1} parent=5 // pred_check
        %p122 = pneg %p121
      $region18: #{tpu_custom_call.1} parent=5 // pred_check_branch
        %124 = sbr.rel (%p122) target = $region20
      $region19: #{tpu_custom_call.1} parent=5 // pred_region
        // Predicated region
        $region21: #{tpu_custom_call.1} parent=19 // pred_check
          %p125 = pneg %p48
        $region22: #{tpu_custom_call.1} parent=19 // pred_check_branch
          %127 = sbr.rel (%p125) target = $region24
        $region23: #{tpu_custom_call.1} parent=19 // pred_region
          %s128 = sand.u32 %s38, 1
          %s129 = scalar_lea.sflag [#allocation3], %s128
          %s130 = sand.u32 %s38, 1
          %s131 = smul.addr %s130, 512
          %s132 = scalar_lea.vmem [#allocation2], %s131
          %s133 = smul.u32 4, %s22
          %s134 = smul.u32 16, %s21
          %s136 = ssub.s32 8192, 8192
          %137 = vsyncadd %s129, %s136
          %s138 = smul.addr %s133, 64
          %s139 = sadd.s32 %s134, %s138
          %s140 = smul.addr %s139, 128
          %s141 = scalar_lea.hbm %s0, %s140
          %s142 = sshll.u32 %s132, 4
          %s143 = int_to_ptr.vmem [resolvable:$true] %s142
          %148 = dma.hbm_to_vmem [thread:$0]  %s141, 8192, %s143, %s129, 8192, 2048, 128
        $region24: #{tpu_custom_call.1} parent=19 // pred_fallthru
          _
      $region20: #{tpu_custom_call.1} parent=5 // pred_fallthru
        _
      %p149 = scmp.le.s32.totalorder 1, %s14
      %p150 = scmp.lt.s32.totalorder %s14, 5
      %p151 = pnand %p149, %p150
      %p152 = pneg %p151
      // Predicated region
      $region25: #{tpu_custom_call.1} parent=5 // pred_check
        _
      $region26: #{tpu_custom_call.1} parent=5 // pred_check_branch
        %154 = sbr.rel (%p151) target = $region28
      $region27: #{tpu_custom_call.1} parent=5 // pred_region
        %s155 = ssub.s32 %s14, 1
        %s156 = sand.u32 %s41, 1
        %s157 = scalar_lea.sflag [#allocation3], %s156
        %s158 = sand.u32 %s41, 1
        %s159 = smul.addr %s158, 512
        %s160 = scalar_lea.vmem [#allocation2], %s159
        // Predicated region
        $region29: #{tpu_custom_call.1} parent=27 // pred_check
          %p161 = pneg %p54
        $region30: #{tpu_custom_call.1} parent=27 // pred_check_branch
          %163 = sbr.rel (%p161) target = $region32
        $region31: #{tpu_custom_call.1} parent=27 // pred_region
          %164 = dma.done %s157, 8192
        $region32: #{tpu_custom_call.1} parent=27 // pred_fallthru
          _
        %s165 = sand.u32 %s41, 1
        %s166 = scalar_lea.sflag [#allocation3], %s165
        %s167 = sand.u32 %s41, 1
        %s168 = smul.addr %s167, 512
        %s169 = scalar_lea.vmem [#allocation2], %s168
        %p170 = pneg %p54
        %p171 = pneg %p51
        %p172 = pneg %p75
        %p173 = pneg %p72
        %p174 = pneg %p103
        %p175 = pneg %p100
        %s176 = sand.u32 %s90, 1
        %s177 = scalar_lea.sflag [#allocation4], %s176
        %s178 = sand.u32 %s90, 1
        %s179 = smul.addr %s178, 512
        %s180 = scalar_lea.vmem [#allocation5], %s179
        %s181 = smul.u32 4, %s24
        %s182 = smul.u32 16, %s23
        %s183 = smul.u32 4, %s24
        %s184 = smul.u32 16, %s23
        %v185 = vld [vmem:[%s160] sm:$0xff]
        %v186 = vld [vmem:[%s160 + $0x8] sm:$0xff]
        %v187 = vld [vmem:[%s160 + $0x10] sm:$0xff]
        %v188 = vld [vmem:[%s160 + $0x18] sm:$0xff]
        %v189 = vld [vmem:[%s160 + $0x20] sm:$0xff]
        %v190 = vld [vmem:[%s160 + $0x28] sm:$0xff]
        %v191 = vld [vmem:[%s160 + $0x30] sm:$0xff]
        %v192 = vld [vmem:[%s160 + $0x38] sm:$0xff]
        %v193 = vld [vmem:[%s160 + $0x40] sm:$0xff]
        %v194 = vld [vmem:[%s160 + $0x48] sm:$0xff]
        %v195 = vld [vmem:[%s160 + $0x50] sm:$0xff]
        %v196 = vld [vmem:[%s160 + $0x58] sm:$0xff]
        %v197 = vld [vmem:[%s160 + $0x60] sm:$0xff]
        %v198 = vld [vmem:[%s160 + $0x68] sm:$0xff]
        %v199 = vld [vmem:[%s160 + $0x70] sm:$0xff]
        %v200 = vld [vmem:[%s160 + $0x78] sm:$0xff]
        %v201 = vld [vmem:[%s160 + $0x80] sm:$0xff]
        %v202 = vld [vmem:[%s160 + $0x88] sm:$0xff]
        %v203 = vld [vmem:[%s160 + $0x90] sm:$0xff]
        %v204 = vld [vmem:[%s160 + $0x98] sm:$0xff]
        %v205 = vld [vmem:[%s160 + $0xa0] sm:$0xff]
        %v206 = vld [vmem:[%s160 + $0xa8] sm:$0xff]
        %v207 = vld [vmem:[%s160 + $0xb0] sm:$0xff]
        %v208 = vld [vmem:[%s160 + $0xb8] sm:$0xff]
        %v209 = vld [vmem:[%s160 + $0xc0] sm:$0xff]
        %v210 = vld [vmem:[%s160 + $0xc8] sm:$0xff]
        %v211 = vld [vmem:[%s160 + $0xd0] sm:$0xff]
        %v212 = vld [vmem:[%s160 + $0xd8] sm:$0xff]
        %v213 = vld [vmem:[%s160 + $0xe0] sm:$0xff]
        %v214 = vld [vmem:[%s160 + $0xe8] sm:$0xff]
        %v215 = vld [vmem:[%s160 + $0xf0] sm:$0xff]
        %v216 = vld [vmem:[%s160 + $0xf8] sm:$0xff]
        %v217 = vld [vmem:[%s160 + $0x100] sm:$0xff]
        %v218 = vld [vmem:[%s160 + $0x108] sm:$0xff]
        %v219 = vld [vmem:[%s160 + $0x110] sm:$0xff]
        %v220 = vld [vmem:[%s160 + $0x118] sm:$0xff]
        %v221 = vld [vmem:[%s160 + $0x120] sm:$0xff]
        %v222 = vld [vmem:[%s160 + $0x128] sm:$0xff]
        %v223 = vld [vmem:[%s160 + $0x130] sm:$0xff]
        %v224 = vld [vmem:[%s160 + $0x138] sm:$0xff]
        %v225 = vld [vmem:[%s160 + $0x140] sm:$0xff]
        %v226 = vld [vmem:[%s160 + $0x148] sm:$0xff]
        %v227 = vld [vmem:[%s160 + $0x150] sm:$0xff]
        %v228 = vld [vmem:[%s160 + $0x158] sm:$0xff]
        %v229 = vld [vmem:[%s160 + $0x160] sm:$0xff]
        %v230 = vld [vmem:[%s160 + $0x168] sm:$0xff]
        %v231 = vld [vmem:[%s160 + $0x170] sm:$0xff]
        %v232 = vld [vmem:[%s160 + $0x178] sm:$0xff]
        %v233 = vld [vmem:[%s160 + $0x180] sm:$0xff]
        %v234 = vld [vmem:[%s160 + $0x188] sm:$0xff]
        %v235 = vld [vmem:[%s160 + $0x190] sm:$0xff]
        %v236 = vld [vmem:[%s160 + $0x198] sm:$0xff]
        %v237 = vld [vmem:[%s160 + $0x1a0] sm:$0xff]
        %v238 = vld [vmem:[%s160 + $0x1a8] sm:$0xff]
        %v239 = vld [vmem:[%s160 + $0x1b0] sm:$0xff]
        %v240 = vld [vmem:[%s160 + $0x1b8] sm:$0xff]
        %v241 = vld [vmem:[%s160 + $0x1c0] sm:$0xff]
        %v242 = vld [vmem:[%s160 + $0x1c8] sm:$0xff]
        %v243 = vld [vmem:[%s160 + $0x1d0] sm:$0xff]
        %v244 = vld [vmem:[%s160 + $0x1d8] sm:$0xff]
        %v245 = vld [vmem:[%s160 + $0x1e0] sm:$0xff]
        %v246 = vld [vmem:[%s160 + $0x1e8] sm:$0xff]
        %v247 = vld [vmem:[%s160 + $0x1f0] sm:$0xff]
        %v248 = vld [vmem:[%s160 + $0x1f8] sm:$0xff]
        %v249 = vld [vmem:[%s1] sm:$0xff]
        %v250 = vld [vmem:[%s1 + $0x8] sm:$0xff]
        %v251 = vld [vmem:[%s1 + $0x10] sm:$0xff]
        %v252 = vld [vmem:[%s1 + $0x18] sm:$0xff]
        %254 = vset.pattern.permute.xlu0 0
        %255 = vperm.xlu0 %254, %v249
        %v256 = vpop.permute.xlu0 %255
        %259 = vset.pattern.permute.xlu0 0
        %260 = vperm.xlu0 %259, %v250
        %v261 = vpop.permute.xlu0 %260
        %264 = vset.pattern.permute.xlu0 0
        %265 = vperm.xlu0 %264, %v251
        %v266 = vpop.permute.xlu0 %265
        %269 = vset.pattern.permute.xlu0 0
        %270 = vperm.xlu0 %269, %v252
        %v271 = vpop.permute.xlu0 %270
        %v273 = vadd.f32 %v185, %v256
        %v274 = vadd.f32 %v186, %v256
        %v275 = vadd.f32 %v187, %v256
        %v276 = vadd.f32 %v188, %v256
        %v277 = vadd.f32 %v189, %v256
        %v278 = vadd.f32 %v190, %v256
        %v279 = vadd.f32 %v191, %v256
        %v280 = vadd.f32 %v192, %v256
        %v281 = vadd.f32 %v193, %v256
        %v282 = vadd.f32 %v194, %v256
        %v283 = vadd.f32 %v195, %v256
        %v284 = vadd.f32 %v196, %v256
        %v285 = vadd.f32 %v197, %v256
        %v286 = vadd.f32 %v198, %v256
        %v287 = vadd.f32 %v199, %v256
        %v288 = vadd.f32 %v200, %v256
        %v289 = vadd.f32 %v201, %v261
        %v290 = vadd.f32 %v202, %v261
        %v291 = vadd.f32 %v203, %v261
        %v292 = vadd.f32 %v204, %v261
        %v293 = vadd.f32 %v205, %v261
        %v294 = vadd.f32 %v206, %v261
        %v295 = vadd.f32 %v207, %v261
        %v296 = vadd.f32 %v208, %v261
        %v297 = vadd.f32 %v209, %v261
        %v298 = vadd.f32 %v210, %v261
        %v299 = vadd.f32 %v211, %v261
        %v300 = vadd.f32 %v212, %v261
        %v301 = vadd.f32 %v213, %v261
        %v302 = vadd.f32 %v214, %v261
        %v303 = vadd.f32 %v215, %v261
        %v304 = vadd.f32 %v216, %v261
        %v305 = vadd.f32 %v217, %v266
        %v306 = vadd.f32 %v218, %v266
        %v307 = vadd.f32 %v219, %v266
        %v308 = vadd.f32 %v220, %v266
        %v309 = vadd.f32 %v221, %v266
        %v310 = vadd.f32 %v222, %v266
        %v311 = vadd.f32 %v223, %v266
        %v312 = vadd.f32 %v224, %v266
        %v313 = vadd.f32 %v225, %v266
        %v314 = vadd.f32 %v226, %v266
        %v315 = vadd.f32 %v227, %v266
        %v316 = vadd.f32 %v228, %v266
        %v317 = vadd.f32 %v229, %v266
        %v318 = vadd.f32 %v230, %v266
        %v319 = vadd.f32 %v231, %v266
        %v320 = vadd.f32 %v232, %v266
        %v321 = vadd.f32 %v233, %v271
        %v322 = vadd.f32 %v234, %v271
        %v323 = vadd.f32 %v235, %v271
        %v324 = vadd.f32 %v236, %v271
        %v325 = vadd.f32 %v237, %v271
        %v326 = vadd.f32 %v238, %v271
        %v327 = vadd.f32 %v239, %v271
        %v328 = vadd.f32 %v240, %v271
        %v329 = vadd.f32 %v241, %v271
        %v330 = vadd.f32 %v242, %v271
        %v331 = vadd.f32 %v243, %v271
        %v332 = vadd.f32 %v244, %v271
        %v333 = vadd.f32 %v245, %v271
        %v334 = vadd.f32 %v246, %v271
        %v335 = vadd.f32 %v247, %v271
        %v336 = vadd.f32 %v248, %v271
        %337 = vst [vmem:[%s180] sm:$0xff] %v273
        %338 = vst [vmem:[%s180 + $0x8] sm:$0xff] %v274
        %339 = vst [vmem:[%s180 + $0x10] sm:$0xff] %v275
        %340 = vst [vmem:[%s180 + $0x18] sm:$0xff] %v276
        %341 = vst [vmem:[%s180 + $0x20] sm:$0xff] %v277
        %342 = vst [vmem:[%s180 + $0x28] sm:$0xff] %v278
        %343 = vst [vmem:[%s180 + $0x30] sm:$0xff] %v279
        %344 = vst [vmem:[%s180 + $0x38] sm:$0xff] %v280
        %345 = vst [vmem:[%s180 + $0x40] sm:$0xff] %v281
        %346 = vst [vmem:[%s180 + $0x48] sm:$0xff] %v282
        %347 = vst [vmem:[%s180 + $0x50] sm:$0xff] %v283
        %348 = vst [vmem:[%s180 + $0x58] sm:$0xff] %v284
        %349 = vst [vmem:[%s180 + $0x60] sm:$0xff] %v285
        %350 = vst [vmem:[%s180 + $0x68] sm:$0xff] %v286
        %351 = vst [vmem:[%s180 + $0x70] sm:$0xff] %v287
        %352 = vst [vmem:[%s180 + $0x78] sm:$0xff] %v288
        %353 = vst [vmem:[%s180 + $0x80] sm:$0xff] %v289
        %354 = vst [vmem:[%s180 + $0x88] sm:$0xff] %v290
        %355 = vst [vmem:[%s180 + $0x90] sm:$0xff] %v291
        %356 = vst [vmem:[%s180 + $0x98] sm:$0xff] %v292
        %357 = vst [vmem:[%s180 + $0xa0] sm:$0xff] %v293
        %358 = vst [vmem:[%s180 + $0xa8] sm:$0xff] %v294
        %359 = vst [vmem:[%s180 + $0xb0] sm:$0xff] %v295
        %360 = vst [vmem:[%s180 + $0xb8] sm:$0xff] %v296
        %361 = vst [vmem:[%s180 + $0xc0] sm:$0xff] %v297
        %362 = vst [vmem:[%s180 + $0xc8] sm:$0xff] %v298
        %363 = vst [vmem:[%s180 + $0xd0] sm:$0xff] %v299
        %364 = vst [vmem:[%s180 + $0xd8] sm:$0xff] %v300
        %365 = vst [vmem:[%s180 + $0xe0] sm:$0xff] %v301
        %366 = vst [vmem:[%s180 + $0xe8] sm:$0xff] %v302
        %367 = vst [vmem:[%s180 + $0xf0] sm:$0xff] %v303
        %368 = vst [vmem:[%s180 + $0xf8] sm:$0xff] %v304
        %369 = vst [vmem:[%s180 + $0x100] sm:$0xff] %v305
        %370 = vst [vmem:[%s180 + $0x108] sm:$0xff] %v306
        %371 = vst [vmem:[%s180 + $0x110] sm:$0xff] %v307
        %372 = vst [vmem:[%s180 + $0x118] sm:$0xff] %v308
        %373 = vst [vmem:[%s180 + $0x120] sm:$0xff] %v309
        %374 = vst [vmem:[%s180 + $0x128] sm:$0xff] %v310
        %375 = vst [vmem:[%s180 + $0x130] sm:$0xff] %v311
        %376 = vst [vmem:[%s180 + $0x138] sm:$0xff] %v312
        %377 = vst [vmem:[%s180 + $0x140] sm:$0xff] %v313
        %378 = vst [vmem:[%s180 + $0x148] sm:$0xff] %v314
        %379 = vst [vmem:[%s180 + $0x150] sm:$0xff] %v315
        %380 = vst [vmem:[%s180 + $0x158] sm:$0xff] %v316
        %381 = vst [vmem:[%s180 + $0x160] sm:$0xff] %v317
        %382 = vst [vmem:[%s180 + $0x168] sm:$0xff] %v318
        %383 = vst [vmem:[%s180 + $0x170] sm:$0xff] %v319
        %384 = vst [vmem:[%s180 + $0x178] sm:$0xff] %v320
        %385 = vst [vmem:[%s180 + $0x180] sm:$0xff] %v321
        %386 = vst [vmem:[%s180 + $0x188] sm:$0xff] %v322
        %387 = vst [vmem:[%s180 + $0x190] sm:$0xff] %v323
        %388 = vst [vmem:[%s180 + $0x198] sm:$0xff] %v324
        %389 = vst [vmem:[%s180 + $0x1a0] sm:$0xff] %v325
        %390 = vst [vmem:[%s180 + $0x1a8] sm:$0xff] %v326
        %391 = vst [vmem:[%s180 + $0x1b0] sm:$0xff] %v327
        %392 = vst [vmem:[%s180 + $0x1b8] sm:$0xff] %v328
        %393 = vst [vmem:[%s180 + $0x1c0] sm:$0xff] %v329
        %394 = vst [vmem:[%s180 + $0x1c8] sm:$0xff] %v330
        %395 = vst [vmem:[%s180 + $0x1d0] sm:$0xff] %v331
        %396 = vst [vmem:[%s180 + $0x1d8] sm:$0xff] %v332
        %397 = vst [vmem:[%s180 + $0x1e0] sm:$0xff] %v333
        %398 = vst [vmem:[%s180 + $0x1e8] sm:$0xff] %v334
        %399 = vst [vmem:[%s180 + $0x1f0] sm:$0xff] %v335
        %400 = vst [vmem:[%s180 + $0x1f8] sm:$0xff] %v336
        %s401 = sand.u32 %s90, 1
        %s402 = scalar_lea.sflag [#allocation4], %s401
        %s403 = sand.u32 %s90, 1
        %s404 = smul.addr %s403, 512
        %s405 = scalar_lea.vmem [#allocation5], %s404
        // Predicated region
        $region33: #{tpu_custom_call.1} parent=27 // pred_check
          %p406 = pneg %p100
        $region34: #{tpu_custom_call.1} parent=27 // pred_check_branch
          %408 = sbr.rel (%p406) target = $region36
        $region35: #{tpu_custom_call.1} parent=27 // pred_region
          %s409 = smul.u32 4, %s24
          %s410 = smul.u32 16, %s23
          %s412 = ssub.s32 8192, 8192
          %413 = vsyncadd %s402, %s412
          %s414 = smul.addr %s409, 64
          %s415 = sadd.s32 %s410, %s414
          %s416 = smul.addr %s415, 128
          %s417 = scalar_lea.hbm %s2, %s416
          %s418 = sshll.u32 %s405, 4
          %s419 = int_to_ptr.vmem [resolvable:$true] %s418
          %424 = dma.vmem_to_hbm [thread:$0]  %s419, 8192, %s417, %s402, 2048, 8192, 128
        $region36: #{tpu_custom_call.1} parent=27 // pred_fallthru
          _
      $region28: #{tpu_custom_call.1} parent=5 // pred_fallthru
        _
      %p425 = scmp.le.s32.totalorder 2, %s14
      // Predicated region
      $region37: #{tpu_custom_call.1} parent=5 // pred_check
        %p426 = pneg %p425
      $region38: #{tpu_custom_call.1} parent=5 // pred_check_branch
        %428 = sbr.rel (%p426) target = $region40
      $region39: #{tpu_custom_call.1} parent=5 // pred_region
        %s429 = ssub.s32 %s14, 2
        // Predicated region
        $region41: #{tpu_custom_call.1} parent=39 // pred_check
          %p430 = pneg %p106
        $region42: #{tpu_custom_call.1} parent=39 // pred_check_branch
          %432 = sbr.rel (%p430) target = $region44
        $region43: #{tpu_custom_call.1} parent=39 // pred_region
          %s433 = sand.u32 %s91, 1
          %s434 = scalar_lea.sflag [#allocation4], %s433
          %s435 = sand.u32 %s91, 1
          %s436 = smul.addr %s435, 512
          %s437 = scalar_lea.vmem [#allocation5], %s436
          %438 = dma.done %s434, 8192
        $region44: #{tpu_custom_call.1} parent=39 // pred_fallthru
          _
      $region40: #{tpu_custom_call.1} parent=5 // pred_fallthru
        _
    $region6: #{tpu_custom_call.1} parent=1 // loop_footer
      %s18 = sadd.s32 1, %s14
    $region7: #{tpu_custom_call.1} parent=1 // loop_footer_branch
      %13 = sbr.rel target = $region3
    $region8: #{tpu_custom_call.1} parent=1 // loop_exit
      _
    %439 = vsyncpa [#allocation3], 1
    %s440 = scalar_lea.sflag [#allocation3], 1
    %441 = vsyncpa %s440, 1
    %442 = vsyncpa [#allocation4], 1
    %s443 = scalar_lea.sflag [#allocation4], 1
    %444 = vsyncpa %s443, 1

</llo_original>
